<compile_context>
chip_gen: v6e
topology: v6e:2x2x1
jax: 0.10.0
libtpu: 0.0.40
codegen_flags: <defaults>
</compile_context>

<pallas_src>
import functools
import math

import jax
import jax.numpy as jnp
from jax.experimental import pallas as pl
from jax.experimental.pallas import tpu as pltpu


def _round_up(x: int, m: int) -> int:
    return (x + m - 1) // m * m


def _rotary_freqs_kernel(tab_ref, out_ref, *, k: int):
    # out_ref tile: (tile_R, W) packed rows; tab_ref: (2, W)
    #   tab_ref[0, lane] = r(lane)            (which of the k folded rows, as float32)
    #   tab_ref[1, lane] = inv_freq[c(lane)]  (tiled inverse frequencies)
    tile_r = out_ref.shape[0]
    row0 = pl.program_id(0) * tile_r                       # absolute packed-row start
    # Packed-row index -> base sequence position (int32, cast once to f32).
    ridx = jax.lax.broadcasted_iota(jnp.int32, (tile_r, 1), 0) + row0
    base = (ridx * k).astype(jnp.float32)                  # (tile_R, 1)
    r = tab_ref[0:1, :]                                    # (1, W)
    inv_freq = tab_ref[1:2, :]                             # (1, W)
    pos = base + r                                         # (tile_R, W), exact ints as f32
    out_ref[...] = pos * inv_freq                          # single multiply, as reference


def _reference(seqlen: int, dim: int, theta: float = 10000.0):
    inv_freq = 1.0 / (theta ** (jnp.arange(0, dim, 2, dtype=jnp.float32) / dim))
    seq = jnp.arange(seqlen, dtype=jnp.float32)
    return jnp.outer(seq, inv_freq)


# Below this output size the pallas_call launch + epilogue dominates; use fused XLA math.
_SMALL_OUTPUT_BYTES = 128 * 1024


def qwen2_vision_rotary_embedding(seqlen: int, dim: int, theta: float = 10000.0,
                                  *, force_pallas: bool = False):
    """Returns freqs of shape (seqlen, dim // 2), float32 — matches the PyTorch forward."""
    assert seqlen >= 1 and dim >= 2
    half = dim // 2

    # Small-seqlen fast path: typical Qwen2-VL rotary seqlens are tiny; the fused
    # outer product is at least as fast and avoids the extra HBM round trip.
    if not force_pallas and seqlen * half * 4 < _SMALL_OUTPUT_BYTES:
        return _reference(seqlen, dim, theta)

    # Lane packing factor: fold k sequence rows into the lane axis so k*half % 128 == 0.
    k = 128 // math.gcd(half, 128)
    w = k * half                                           # lane width, multiple of 128
    assert seqlen < (1 << 31) // max(k, 1), "int32 position math would overflow"

    # inv_freq exactly as the PyTorch module computes it (host-side glue, tiny).
    inv_freq = 1.0 / (theta ** (jnp.arange(0, dim, 2, dtype=jnp.float32) / dim))  # (half,)
    r_tab = jnp.repeat(jnp.arange(k, dtype=jnp.float32), half)                    # (W,)
    g_tab = jnp.tile(inv_freq, k)                                                 # (W,)
    lane_tab = jnp.stack([r_tab, g_tab], axis=0)                                  # (2, W)

    # Packed rows: only round to sublane (8) alignment — the last grid block may be
    # partial; Pallas clips its HBM writeback (no full-tile padding waste).
    r_total = pl.cdiv(seqlen, k)                           # packed rows actually needed
    r_out = _round_up(r_total, 8)                          # allocated packed rows

    # Tile size: 8-aligned, capped at ~2 MiB per output tile (double-buffered -> <=4 MiB
    # VMEM, safe on all generations).  Also cap so the grid has >= 2 steps when there is
    # enough work, letting v7x shard the "parallel" axis across both TensorCores.
    max_rows_vmem = max(8, ((2 << 20) // (w * 4)) // 8 * 8)
    split_cap = _round_up(pl.cdiv(r_out, 2), 8) if r_out >= 16 else r_out
    tile_r = max(8, min(_round_up(r_out, 8), 2048, max_rows_vmem, split_cap))
    grid = (pl.cdiv(r_out, tile_r),)

    cost = pl.CostEstimate(
        flops=2 * r_out * w,
        transcendentals=0,
        bytes_accessed=r_out * w * 4 + 2 * w * 4,
    )

    packed = pl.pallas_call(
        functools.partial(_rotary_freqs_kernel, k=k),
        out_shape=jax.ShapeDtypeStruct((r_out, w), jnp.float32),
        grid_spec=pltpu.PrefetchScalarGridSpec(
            num_scalar_prefetch=0,
            grid=grid,
            in_specs=[pl.BlockSpec((2, w), lambda i: (0, 0))],   # constant -> fetched once
            out_specs=pl.BlockSpec((tile_r, w), lambda i: (i, 0)),
        ),
        compiler_params=pltpu.CompilerParams(
            dimension_semantics=("parallel",)),
        cost_estimate=cost,
    )(lane_tab)

    # Undo lane packing: contiguous row-major reshape, then trim the <8-row padding.
    # TODO(synk): under jit this slice should fuse into the RoPE consumer; best is to
    #             consume the packed layout directly and skip this epilogue.
    freqs = packed.reshape(r_out * k, half)[:seqlen]
    return freqs


if __name__ == "__main__":
    # No tensor inputs to this module; PRNGKey only to satisfy the determinism contract.
    _ = jax.random.PRNGKey(0)

    theta = 10000.0
    ok = True

    # Fast-path configs (tiny outputs, pure-JAX branch) and forced-Pallas configs
    # (exercise the kernel itself at small shapes), plus a moderate natural-Pallas one.
    configs = [
        (8, 32, False),      # fast path
        (100, 80, False),    # fast path
        (8, 32, True),       # Pallas path, half=16 -> k=8,  W=128
        (100, 80, True),     # Pallas path, half=40 -> k=16, W=640
        (2048, 80, False),   # Pallas path chosen naturally, grid split >= 2
    ]
    for seqlen, dim, force in configs:
        freqs = qwen2_vision_rotary_embedding(seqlen, dim, theta, force_pallas=force)
        freqs = jax.block_until_ready(freqs)

        ref = _reference(seqlen, dim, theta)
        assert freqs.shape == (seqlen, dim // 2), (freqs.shape, seqlen, dim)
        assert freqs.dtype == jnp.float32, freqs.dtype
        assert jnp.allclose(freqs, ref, rtol=1e-5, atol=1e-6), (
            f"mismatch vs reference for seqlen={seqlen}, dim={dim}, force={force}")

    if ok:
        print("KERNEL_OK")
</pallas_src>

<mosaic_0001>
module attributes {stable_mosaic.version = 11 : i64} {
  func.func @_rotary_freqs_kernel(%arg0: i32, %arg1: memref<2x128xf32, #tpu.memory_space<vmem>>, %arg2: memref<8x128xf32, #tpu.memory_space<vmem>>) attributes {dimension_semantics = [#tpu.dimension_semantics<parallel>], iteration_bounds = array<i64: 1>, scalar_prefetch = 0 : i64, scratch_operands = 0 : i64, tpu.core_type = #tpu.core_type<tc>, window_params = [{pipeline_mode = #tpu.pipeline_mode<synchronous>, transform_indices = @transform_0, window_bounds = array<i64: 2, 128>}, {transform_indices = @transform_1, window_bounds = array<i64: 8, 128>}]} {
    %c8_i32 = arith.constant 8 : i32
    %0 = arith.muli %arg0, %c8_i32 : i32
    %1 = tpu.iota {dimensions = array<i32: 0>} : vector<8x1xi32>
    %2 = vector.broadcast %0 : i32 to vector<8x1xi32>
    %3 = arith.addi %1, %2 : vector<8x1xi32>
    %c8_i32_0 = arith.constant 8 : i32
    %4 = vector.broadcast %c8_i32_0 : i32 to vector<8x1xi32>
    %5 = arith.muli %3, %4 : vector<8x1xi32>
    %6 = arith.sitofp %5 : vector<8x1xi32> to vector<8x1xf32>
    %c0 = arith.constant 0 : index
    %c0_1 = arith.constant 0 : index
    %7 = vector.load %arg1[%c0, %c0_1] : memref<2x128xf32, #tpu.memory_space<vmem>>, vector<1x128xf32>
    %c1 = arith.constant 1 : index
    %c0_2 = arith.constant 0 : index
    %8 = vector.load %arg1[%c1, %c0_2] : memref<2x128xf32, #tpu.memory_space<vmem>>, vector<1x128xf32>
    %9 = vector.broadcast %6 : vector<8x1xf32> to vector<8x128xf32>
    %10 = vector.broadcast %7 : vector<1x128xf32> to vector<8x128xf32>
    %11 = arith.addf %9, %10 : vector<8x128xf32>
    %12 = vector.broadcast %8 : vector<1x128xf32> to vector<8x128xf32>
    %13 = arith.mulf %11, %12 : vector<8x128xf32>
    %c0_3 = arith.constant 0 : index
    %c0_4 = arith.constant 0 : index
    %14 = vector.load %arg2[%c0_3, %c0_4] : memref<8x128xf32, #tpu.memory_space<vmem>>, vector<8x128xf32>
    tpu.vector_store %arg2[%c0_3, %c0_4], %13 {strides = array<i32>} : memref<8x128xf32, #tpu.memory_space<vmem>>, vector<8x128xf32>,
    return
  }
  func.func @transform_0(%arg0: i32) -> (i32, i32) {
    %c0_i32 = arith.constant 0 : i32
    %c0_i32_0 = arith.constant 0 : i32
    %c0_i32_1 = arith.constant 0 : i32
    return %c0_i32, %c0_i32_0 : i32, i32
  }
  func.func @transform_1(%arg0: i32) -> (i32, i32) {
    %c0_i32 = arith.constant 0 : i32
    %c0_i32_0 = arith.constant 0 : i32
    return %arg0, %c0_i32 : i32, i32
  }
}

</mosaic_0001>

<llo_original>
// kernel: tpu_custom_call.1
$region0: #{tpu_custom_call.1}
  #allocation0 [shape = 'u32[]', space=smem, size = 0x4, offset = 0x4, fixed_abs, tag = 'smem constant byte address 0x4 - core index']
  #allocation1 [shape = 'u32[144,128]{1,0:T(1,128)}', space=vmem, size = 0x12000, scoped, tag = 'internal scratch']
  %s0 = inlined_call_operand.hbm [shape: f32[2,128], index: 0, kind: input, shape index: {}]
  %s1 = inlined_call_operand.hbm [shape: f32[8,128], index: 1, kind: output, shape index: {}]
  %s2 = sld [smem:[#allocation0]]
  $region18: #{tpu_custom_call.1} parent=0
    _
  %s4 = ssub.s32 1, %s2
  %s5 = scalar_select 0, %s4, %s2
  $region1: #{tpu_custom_call.1} parent=0
    #allocation2 [shape = 'u8[1024]{0}', space=vmem, size = 0x400, scoped, tag = 'input window, operand 0, single buffered']
    #allocation3 [shape = 's32[1]{0}', space=sflag, size = 0x4, scoped, tag = 'scoped memory for tpu_custom_call.1']
    #allocation4 [shape = 's32[1]{0}', space=sflag, size = 0x4, scoped, tag = 'scoped memory for tpu_custom_call.1']
    #allocation5 [shape = 'u8[4096]{0}', space=vmem, size = 0x1000, scoped, tag = 'output window, operand 0, single buffered']
    %6 = vsyncpa [#allocation3], 0
    %7 = vsyncpa [#allocation4], 0
    // Predicated region
    $region2: #{tpu_custom_call.1} parent=1 // pred_check
      _
    $region3: #{tpu_custom_call.1} parent=1 // pred_check_branch
      %9 = sbr.rel (0) target = $region5
    $region4: #{tpu_custom_call.1} parent=1 // pred_region
      %s11 = ssub.s32 32, 32
      %12 = vsyncadd [#allocation3], %s11
      %s14 = sshll.u32 [#allocation2], 4
      %s15 = int_to_ptr.vmem [resolvable:$true] %s14
      %17 = dma.hbm_to_vmem [thread:$0]  %s0, 32, %s15, [#allocation3]
    $region5: #{tpu_custom_call.1} parent=1 // pred_fallthru
      _
    // Predicated region
    $region6: #{tpu_custom_call.1} parent=1 // pred_check
      _
    $region7: #{tpu_custom_call.1} parent=1 // pred_check_branch
      %19 = sbr.rel (0) target = $region9
    $region8: #{tpu_custom_call.1} parent=1 // pred_region
      %20 = dma.done [#allocation3], 32
    $region9: #{tpu_custom_call.1} parent=1 // pred_fallthru
      _
    %s21 = smul.u32 0, 8
    %v22 = vlaneseq
    %v23 = vshrl.u32 %v22, 7
    %v24 = vstv %s21
    %v25 = vadd.s32 %v23, %v24
    %v26 = vmul.u32 %v25, 8
    %v27 = vcvt.s32.f32 %v26
    %v28 = vld [vmem:[#allocation2] sm:$0x1]
    %v29 = vld [vmem:[#allocation2 + $0x1] sm:$0x1]
    %v30 = vlaneseq
    %v31 = vshrl.u32 %v30, 7
    %v32 = vsub.s32 0, %v31
    %v33 = vrot.slane %v28, %v32
    %v34 = vadd.f32 %v27, %v33
    %v35 = vlaneseq
    %v36 = vshrl.u32 %v35, 7
    %v37 = vsub.s32 0, %v36
    %v38 = vrot.slane %v29, %v37
    %v39 = vmul.f32 %v34, %v38
    %40 = vst [vmem:[#allocation5] sm:$0xff] %v39
    // Predicated region
    $region10: #{tpu_custom_call.1} parent=1 // pred_check
      _
    $region11: #{tpu_custom_call.1} parent=1 // pred_check_branch
      %42 = sbr.rel (0) target = $region13
    $region12: #{tpu_custom_call.1} parent=1 // pred_region
      %s44 = ssub.s32 128, 128
      %45 = vsyncadd [#allocation4], %s44
      %s47 = sshll.u32 [#allocation5], 4
      %s48 = int_to_ptr.vmem [resolvable:$true] %s47
      %50 = dma.vmem_to_hbm [thread:$0]  %s48, 128, %s1, [#allocation4]
    $region13: #{tpu_custom_call.1} parent=1 // pred_fallthru
      _
    // Predicated region
    $region14: #{tpu_custom_call.1} parent=1 // pred_check
      _
    $region15: #{tpu_custom_call.1} parent=1 // pred_check_branch
      %52 = sbr.rel (0) target = $region17
    $region16: #{tpu_custom_call.1} parent=1 // pred_region
      %53 = dma.done [#allocation4], 128
    $region17: #{tpu_custom_call.1} parent=1 // pred_fallthru
      _
    %54 = vsyncpa [#allocation3], 1
    %55 = vsyncpa [#allocation4], 1

</llo_original>
